<compile_context>
chip_gen: v7x
topology: tpu7x:2x2x1
jax: 0.10.0
libtpu: 0.0.40
codegen_flags: <defaults>
</compile_context>

<pallas_src>
import functools

import jax
import jax.numpy as jnp
import numpy as np
from jax import lax
from jax.experimental import pallas as pl
from jax.experimental.pallas import tpu as pltpu


def _prep_kernel(zi_ref, zj_ref, xn_ref, *, eps):
    """Normalize both halves and write the 'concatenated' bf16 embedding."""
    eps2 = jnp.float32(eps * eps)
    zi = zi_ref[...].astype(jnp.float32)
    zj = zj_ref[...].astype(jnp.float32)
    # max(||x||, eps) == sqrt(max(||x||^2, eps^2)); rsqrt + multiply (EUP + VPU)
    # instead of sqrt + clamp + divide.
    inv_i = lax.rsqrt(jnp.maximum(jnp.sum(zi * zi, axis=-1, keepdims=True), eps2))
    inv_j = lax.rsqrt(jnp.maximum(jnp.sum(zj * zj, axis=-1, keepdims=True), eps2))
    xn_ref[0] = (zi * inv_i).astype(xn_ref.dtype)
    xn_ref[1] = (zj * inv_j).astype(xn_ref.dtype)


def _ntxent_kernel(xn_ref, dmask_ref, pmask_ref, out_ref,
                   xr_scr, pos_scr, m_scr, l_scr, *, inv_temp, tile):
    """Flash-style NT-Xent: per row tile, stream column tiles with online LSE."""
    i = pl.program_id(0)          # row tile (parallel)
    j = pl.program_id(1)          # column tile (reduction, arbitrary, last)
    t = tile

    @pl.when(j == 0)
    def _init():
        # Cache the temperature-scaled row operand (bf16 for the MXU) and
        # reset the online-logsumexp state for this row tile.
        roff = pl.multiple_of(i * t, t)
        xr = xn_ref[pl.ds(roff, t), :].astype(jnp.float32)          # (T, D)
        xr_scr[...] = (xr * inv_temp).astype(xr_scr.dtype)
        m_scr[...] = jnp.full(m_scr.shape, -jnp.inf, dtype=m_scr.dtype)
        l_scr[...] = jnp.zeros(l_scr.shape, dtype=l_scr.dtype)

    coff = pl.multiple_of(j * t, t)
    xc = xn_ref[pl.ds(coff, t), :]                                   # (T, D) bf16

    # Scaled similarities for this tile: A @ B^T via a last-dim contraction
    # (native MXU form, bf16 operands, f32 accumulation, no transpose).
    s = lax.dot_general(xr_scr[...], xc, (((1,), (1,)), ((), ())),
                        preferred_element_type=jnp.float32)          # (T, T) f32

    # Positive logit for each row = similarity with its adjacent pair partner
    # (target = [1, 0, 3, 2, ...]).  The partner column lives in the diagonal
    # tile only, so extract it there with a precomputed selector matrix.
    @pl.when(i == j)
    def _grab_pos():
        pos_scr[...] = jnp.sum(s * pmask_ref[...], axis=-1, keepdims=True)

    # Mask self-similarity: additive -1e30 eye mask, active only on diagonal
    # tiles (scalar gate), no per-tile iotas / compares.
    gate = (i == j).astype(jnp.float32)
    logits = s + dmask_ref[...] * gate

    # Online, numerically stable logsumexp across column tiles.
    m_prev = m_scr[...]
    m_new = jnp.maximum(m_prev, jnp.max(logits, axis=-1, keepdims=True))
    alpha = jnp.exp(m_prev - m_new)
    l_scr[...] = l_scr[...] * alpha + jnp.sum(jnp.exp(logits - m_new),
                                              axis=-1, keepdims=True)
    m_scr[...] = m_new

    @pl.when(j == pl.num_programs(1) - 1)
    def _finalize():
        lse = m_scr[...] + jnp.log(l_scr[...])
        out_ref[...] = lse - pos_scr[...]            # per-row cross-entropy


def _pick_tile(n, cap=512):
    """Largest multiple-of-8 divisor of n up to `cap`; fall back to n itself."""
    best = None
    for t in range(8, min(n, cap) + 1, 8):
        if n % t == 0:
            best = t
    return best if best is not None else n


def ntxent_loss(z_i, z_j, temperature=0.5, eps=1e-8):
    """Pallas implementation of NTXentLoss.forward."""
    if z_i.shape != z_j.shape or z_i.ndim != 2:
        raise ValueError("z_i and z_j must be 2-D with identical shapes")
    b, d = z_i.shape
    n = 2 * b

    # ---- Kernel 1: normalize + in-kernel concat -> bf16 (2, B, D). ----------
    prep = pl.pallas_call(
        functools.partial(_prep_kernel, eps=float(eps)),
        out_shape=jax.ShapeDtypeStruct((2, b, d), jnp.bfloat16),
        grid=(1,),
        in_specs=[pl.BlockSpec((b, d), lambda k: (0, 0)),
                  pl.BlockSpec((b, d), lambda k: (0, 0))],
        out_specs=pl.BlockSpec((2, b, d), lambda k: (0, 0, 0)),
    )
    xn = prep(z_i, z_j).reshape(n, d)      # contiguous collapse -> free reshape

    # ---- Kernel 2: tiled NT-Xent with online logsumexp. ---------------------
    t = _pick_tile(n)
    grid = (n // t, n // t)

    # Precomputed (T, T) helpers: additive diagonal mask and positive-pair
    # selector (target partner of row r is r ^ 1 inside an even-aligned tile).
    eye = np.eye(t, dtype=np.float32)
    dmask = jnp.asarray(eye * np.float32(-1e30))
    rr = np.arange(t)
    pmask_np = np.zeros((t, t), dtype=np.float32)
    pmask_np[rr, rr ^ 1] = 1.0
    pmask = jnp.asarray(pmask_np)

    inv_temp = 1.0 / float(temperature)
    cost = pl.CostEstimate(
        flops=2 * n * n * d + 8 * n * n,
        transcendentals=n * n,
        bytes_accessed=n * d * 2 + 2 * t * t * 4 + n * 4,
    )

    per_row = pl.pallas_call(
        functools.partial(_ntxent_kernel, inv_temp=inv_temp, tile=t),
        out_shape=jax.ShapeDtypeStruct((n, 1), jnp.float32),
        grid=grid,
        in_specs=[
            pl.BlockSpec((n, d), lambda i, j: (0, 0)),   # xn: fully VMEM-resident
            pl.BlockSpec((t, t), lambda i, j: (0, 0)),   # diagonal mask
            pl.BlockSpec((t, t), lambda i, j: (0, 0)),   # positive-pair selector
        ],
        out_specs=pl.BlockSpec((t, 1), lambda i, j: (i, 0)),
        scratch_shapes=[
            pltpu.VMEM((t, d), jnp.bfloat16),   # scaled row operand
            pltpu.VMEM((t, 1), jnp.float32),    # positive logits
            pltpu.VMEM((t, 1), jnp.float32),    # running max
            pltpu.VMEM((t, 1), jnp.float32),    # running exp-sum
        ],
        compiler_params=pltpu.CompilerParams(
            dimension_semantics=("parallel", "arbitrary"),
            vmem_limit_bytes=64 * 1024 * 1024,
        ),
        cost_estimate=cost,
    )(xn, dmask, pmask)

    return jnp.mean(per_row)


def _reference_loss(z_i, z_j, temperature=0.5, eps=1e-8):
    """Pure-JAX f32 reference mirroring the PyTorch module, for validation."""
    x = jnp.concatenate([z_i, z_j], axis=0).astype(jnp.float32)
    norm = jnp.maximum(jnp.linalg.norm(x, axis=-1, keepdims=True), eps)
    xn = x / norm
    s = xn @ xn.T
    n = s.shape[0]
    logits = jnp.where(jnp.eye(n, dtype=bool), -jnp.inf, s) / temperature
    tgt = jnp.arange(n)
    tgt = tgt.at[0::2].add(1).at[1::2].add(-1)
    lse = jax.scipy.special.logsumexp(logits, axis=-1)
    pos = logits[jnp.arange(n), tgt]
    return jnp.mean(lse - pos)


if __name__ == "__main__":
    key = jax.random.PRNGKey(0)
    k_i, k_j = jax.random.split(key)
    B, D = 4, 32                      # small projection-head embeddings
    z_i = jax.random.normal(k_i, (B, D), dtype=jnp.float32)
    z_j = jax.random.normal(k_j, (B, D), dtype=jnp.float32)

    loss = ntxent_loss(z_i, z_j, temperature=0.5)
    loss = jax.block_until_ready(loss)

    ref = jax.block_until_ready(_reference_loss(z_i, z_j, temperature=0.5))
    assert np.isfinite(float(loss)), "loss is not finite"
    # bf16 MXU similarities shift logits at the ~1e-3 level vs the f32
    # reference, so the tolerance is loosened accordingly.
    np.testing.assert_allclose(np.asarray(loss), np.asarray(ref),
                               rtol=2e-2, atol=2e-2)

    print("KERNEL_OK")
</pallas_src>

<mosaic_0001>
module attributes {stable_mosaic.version = 11 : i64} {
  func.func @_prep_kernel(%arg0: i32, %arg1: memref<4x32xf32, #tpu.memory_space<vmem>>, %arg2: memref<4x32xf32, #tpu.memory_space<vmem>>, %arg3: memref<2x4x32xbf16, #tpu.memory_space<vmem>>) attributes {dimension_semantics = [#tpu.dimension_semantics<arbitrary>], iteration_bounds = array<i64: 1>, scalar_prefetch = 0 : i64, scratch_operands = 0 : i64, tpu.core_type = #tpu.core_type<tc>, window_params = [{pipeline_mode = #tpu.pipeline_mode<synchronous>, transform_indices = @transform_0, window_bounds = array<i64: 4, 32>}, {pipeline_mode = #tpu.pipeline_mode<synchronous>, transform_indices = @transform_1, window_bounds = array<i64: 4, 32>}, {pipeline_mode = #tpu.pipeline_mode<synchronous>, transform_indices = @transform_2, window_bounds = array<i64: 2, 4, 32>}]} {
    %c0 = arith.constant 0 : index
    %c0_0 = arith.constant 0 : index
    %0 = vector.load %arg1[%c0, %c0_0] : memref<4x32xf32, #tpu.memory_space<vmem>>, vector<4x32xf32>
    %c0_1 = arith.constant 0 : index
    %c0_2 = arith.constant 0 : index
    %1 = vector.load %arg2[%c0_1, %c0_2] : memref<4x32xf32, #tpu.memory_space<vmem>>, vector<4x32xf32>
    %2 = arith.mulf %0, %0 : vector<4x32xf32>
    %cst = arith.constant dense<0.000000e+00> : vector<4xf32>
    %3 = vector.multi_reduction <add>, %2, %cst [1] : vector<4x32xf32> to vector<4xf32>
    %4 = vector.shape_cast %3 : vector<4xf32> to vector<4x1xf32>
    %cst_3 = arith.constant 1.000000e-16 : f32
    %5 = vector.broadcast %cst_3 : f32 to vector<4x1xf32>
    %6 = arith.maximumf %4, %5 : vector<4x1xf32>
    %7 = math.rsqrt %6 : vector<4x1xf32>
    %8 = arith.mulf %1, %1 : vector<4x32xf32>
    %cst_4 = arith.constant dense<0.000000e+00> : vector<4xf32>
    %9 = vector.multi_reduction <add>, %8, %cst_4 [1] : vector<4x32xf32> to vector<4xf32>
    %10 = vector.shape_cast %9 : vector<4xf32> to vector<4x1xf32>
    %cst_5 = arith.constant 1.000000e-16 : f32
    %11 = vector.broadcast %cst_5 : f32 to vector<4x1xf32>
    %12 = arith.maximumf %10, %11 : vector<4x1xf32>
    %13 = math.rsqrt %12 : vector<4x1xf32>
    %14 = vector.broadcast %7 : vector<4x1xf32> to vector<4x32xf32>
    %15 = arith.mulf %0, %14 : vector<4x32xf32>
    %16 = arith.truncf %15 : vector<4x32xf32> to vector<4x32xbf16>
    %c0_6 = arith.constant 0 : index
    %c0_7 = arith.constant 0 : index
    %c0_8 = arith.constant 0 : index
    %17 = vector.load %arg3[%c0_6, %c0_7, %c0_8] : memref<2x4x32xbf16, #tpu.memory_space<vmem>>, vector<1x4x32xbf16>
    %18 = vector.shape_cast %17 : vector<1x4x32xbf16> to vector<4x32xbf16>
    %19 = vector.shape_cast %16 : vector<4x32xbf16> to vector<1x4x32xbf16>
    tpu.vector_store %arg3[%c0_6, %c0_7, %c0_8], %19 {strides = array<i32>} : memref<2x4x32xbf16, #tpu.memory_space<vmem>>, vector<1x4x32xbf16>,
    %20 = vector.broadcast %13 : vector<4x1xf32> to vector<4x32xf32>
    %21 = arith.mulf %1, %20 : vector<4x32xf32>
    %22 = arith.truncf %21 : vector<4x32xf32> to vector<4x32xbf16>
    %c1 = arith.constant 1 : index
    %c0_9 = arith.constant 0 : index
    %c0_10 = arith.constant 0 : index
    %23 = vector.load %arg3[%c1, %c0_9, %c0_10] : memref<2x4x32xbf16, #tpu.memory_space<vmem>>, vector<1x4x32xbf16>
    %24 = vector.shape_cast %23 : vector<1x4x32xbf16> to vector<4x32xbf16>
    %25 = vector.shape_cast %22 : vector<4x32xbf16> to vector<1x4x32xbf16>
    tpu.vector_store %arg3[%c1, %c0_9, %c0_10], %25 {strides = array<i32>} : memref<2x4x32xbf16, #tpu.memory_space<vmem>>, vector<1x4x32xbf16>,
    return
  }
  func.func @transform_0(%arg0: i32) -> (i32, i32) {
    %c0_i32 = arith.constant 0 : i32
    %c0_i32_0 = arith.constant 0 : i32
    %c0_i32_1 = arith.constant 0 : i32
    return %c0_i32, %c0_i32_0 : i32, i32
  }
  func.func @transform_1(%arg0: i32) -> (i32, i32) {
    %c0_i32 = arith.constant 0 : i32
    %c0_i32_0 = arith.constant 0 : i32
    %c0_i32_1 = arith.constant 0 : i32
    return %c0_i32, %c0_i32_0 : i32, i32
  }
  func.func @transform_2(%arg0: i32) -> (i32, i32, i32) {
    %c0_i32 = arith.constant 0 : i32
    %c0_i32_0 = arith.constant 0 : i32
    %c0_i32_1 = arith.constant 0 : i32
    %c0_i32_2 = arith.constant 0 : i32
    return %c0_i32, %c0_i32_0, %c0_i32_1 : i32, i32, i32
  }
}

</mosaic_0001>

<llo_original>
// kernel: tpu_custom_call.1
$region0: #{tpu_custom_call.1}
  #allocation0 [shape = 'u32[]', space=smem, size = 0x4, offset = 0x4, fixed_abs, tag = 'smem constant byte address 0x4 - core index']
  #allocation1 [shape = 'u32[144,128]{1,0:T(1,128)}', space=vmem, size = 0x12000, scoped, tag = 'internal scratch']
  %s0 = inlined_call_operand.hbm [shape: f32[4,32], index: 0, kind: input, shape index: {}]
  %s1 = inlined_call_operand.hbm [shape: f32[4,32], index: 1, kind: input, shape index: {}]
  %s2 = inlined_call_operand.hbm [shape: bf16[2,4,32], index: 2, kind: output, shape index: {}]
  %s3 = sld [smem:[#allocation0]]
  $region26: #{tpu_custom_call.1} parent=0
    _
  %s5 = ssub.s32 1, %s3
  %s6 = scalar_select 0, %s5, %s3
  $region1: #{tpu_custom_call.1} parent=0
    #allocation2 [shape = 'u8[2048]{0}', space=vmem, size = 0x800, scoped, tag = 'input window, operand 0, single buffered']
    #allocation3 [shape = 's32[1]{0}', space=sflag, size = 0x4, scoped, tag = 'scoped memory for tpu_custom_call.1']
    #allocation4 [shape = 's32[1]{0}', space=sflag, size = 0x4, scoped, tag = 'scoped memory for tpu_custom_call.1']
    #allocation5 [shape = 'u8[2048]{0}', space=vmem, size = 0x800, scoped, tag = 'input window, operand 1, single buffered']
    #allocation6 [shape = 's32[1]{0}', space=sflag, size = 0x4, scoped, tag = 'scoped memory for tpu_custom_call.1']
    #allocation7 [shape = 'u8[2048]{0}', space=vmem, size = 0x800, scoped, tag = 'output window, operand 0, single buffered']
    %7 = vsyncpa [#allocation3], 0
    %8 = vsyncpa [#allocation6], 0
    %9 = vsyncpa [#allocation4], 0
    // Predicated region
    $region2: #{tpu_custom_call.1} parent=1 // pred_check
      _
    $region3: #{tpu_custom_call.1} parent=1 // pred_check_branch
      %11 = sbr.rel (0) target = $region5
    $region4: #{tpu_custom_call.1} parent=1 // pred_region
      %s13 = ssub.s32 64, 64
      %14 = vsyncadd [#allocation3], %s13
      %s16 = sshll.u32 [#allocation2], 4
      %s17 = int_to_ptr.vmem [resolvable:$true] %s16
      %19 = dma.hbm_to_vmem [thread:$0]  %s0, 64, %s17, [#allocation3]
    $region5: #{tpu_custom_call.1} parent=1 // pred_fallthru
      _
    // Predicated region
    $region6: #{tpu_custom_call.1} parent=1 // pred_check
      _
    $region7: #{tpu_custom_call.1} parent=1 // pred_check_branch
      %21 = sbr.rel (0) target = $region9
    $region8: #{tpu_custom_call.1} parent=1 // pred_region
      %s23 = ssub.s32 64, 64
      %24 = vsyncadd [#allocation6], %s23
      %s26 = sshll.u32 [#allocation5], 4
      %s27 = int_to_ptr.vmem [resolvable:$true] %s26
      %29 = dma.hbm_to_vmem [thread:$0]  %s1, 64, %s27, [#allocation6]
    $region9: #{tpu_custom_call.1} parent=1 // pred_fallthru
      _
    // Predicated region
    $region10: #{tpu_custom_call.1} parent=1 // pred_check
      _
    $region11: #{tpu_custom_call.1} parent=1 // pred_check_branch
      %31 = sbr.rel (0) target = $region13
    $region12: #{tpu_custom_call.1} parent=1 // pred_region
      %32 = dma.done [#allocation3], 64
    $region13: #{tpu_custom_call.1} parent=1 // pred_fallthru
      _
    // Predicated region
    $region14: #{tpu_custom_call.1} parent=1 // pred_check
      _
    $region15: #{tpu_custom_call.1} parent=1 // pred_check_branch
      %34 = sbr.rel (0) target = $region17
    $region16: #{tpu_custom_call.1} parent=1 // pred_region
      %35 = dma.done [#allocation6], 64
    $region17: #{tpu_custom_call.1} parent=1 // pred_fallthru
      _
    %v36 = vld [vmem:[#allocation2] sm:$0xf]
    %v37 = vld [vmem:[#allocation5] sm:$0xf]
    %v38 = vmul.f32 %v36, %v36
    %vm39 = vcmask 257024
    %v40 = vsel %vm39, %v38, 0.0
    %41 = vadd.xlane.f32.xlu0 %v40
    %v42 = vpop.xlane.xlu0 %41
    %v43 = vmax.f32 %v42, 1e-16
    %v44 = vrsqrt.pop %v43
    %v45 = vmul.f32 %v37, %v37
    %v46 = vsel %vm39, %v45, 0.0
    %47 = vadd.xlane.f32.xlu0 %v46
    %v48 = vpop.xlane.xlu0 %47
    %v49 = vmax.f32 %v48, 1e-16
    %v50 = vrsqrt.pop %v49
    %v51 = vmul.f32 %v36, %v44
    %v52 = vpack.c.bf16 %v51, %v51
    %vm53 = vcmask 254976
    %54 = vst.msk [vmem:[#allocation7] sm:$0x3] %vm53, %v52
    %v55 = vmul.f32 %v37, %v50
    %v56 = vpack.c.bf16 %v55, %v55
    %s57 = scalar_lea.vmem [#allocation7], 2
    %58 = vst.msk [vmem:[%s57] sm:$0x3] %vm53, %v56
    // Predicated region
    $region18: #{tpu_custom_call.1} parent=1 // pred_check
      _
    $region19: #{tpu_custom_call.1} parent=1 // pred_check_branch
      %60 = sbr.rel (0) target = $region21
    $region20: #{tpu_custom_call.1} parent=1 // pred_region
      %s62 = ssub.s32 64, 64
      %63 = vsyncadd [#allocation4], %s62
      %s64 = sshll.u32 [#allocation7], 4
      %s65 = int_to_ptr.vmem [resolvable:$true] %s64
      %70 = dma.vmem_to_hbm [thread:$0]  %s65, 64, %s2, [#allocation4], 32, 32, 2
    $region21: #{tpu_custom_call.1} parent=1 // pred_fallthru
      _
    // Predicated region
    $region22: #{tpu_custom_call.1} parent=1 // pred_check
      _
    $region23: #{tpu_custom_call.1} parent=1 // pred_check_branch
      %72 = sbr.rel (0) target = $region25
    $region24: #{tpu_custom_call.1} parent=1 // pred_region
      %73 = dma.done [#allocation4], 64
    $region25: #{tpu_custom_call.1} parent=1 // pred_fallthru
      _
    %74 = vsyncpa [#allocation3], 1
    %75 = vsyncpa [#allocation6], 1
    %76 = vsyncpa [#allocation4], 1

</llo_original>
